<compile_context>
chip_gen: v7x
topology: tpu7x:2x2x1
jax: 0.10.0
libtpu: 0.0.40
codegen_flags: <defaults>
</compile_context>

<pallas_src>
import functools
import math

import numpy as np
import jax
import jax.numpy as jnp
from jax.experimental import pallas as pl
from jax.experimental.pallas import tpu as pltpu


def _cdiv(a, b):
    return -(-a // b)


def _round_up(n, m):
    return _cdiv(n, m) * m


def _mlp_kernel(x_ref,
                w0_ref, b0_ref, w1_ref, b1_ref, w2_ref, b2_ref,
                w3_ref, b3_ref, w4_ref, b4_ref, w5_ref, b5_ref,
                o_ref, *, tanh_dtype=jnp.float32):
    cdt = w1_ref.dtype                  # MXU operand dtype for activations

    def dense(h, w_ref, b_ref):
        # f32 accumulation on the MXU; bias kept in f32 and added post-acc.
        return jnp.dot(h, w_ref[...], preferred_element_type=jnp.float32) + b_ref[...]

    def act(z):
        # tanh in bf16 on v6e/v7x (2x EUP rate), f32 elsewhere; store in cdt.
        return jnp.tanh(z.astype(tanh_dtype)).astype(cdt)

    h = x_ref[...]                      # (TB/P, 2P), normalization folded
    h = act(dense(h, w0_ref, b0_ref))   # input_layer  (block-diag packed)
    h = act(dense(h, w1_ref, b1_ref))   # h1_layer
    h = act(dense(h, w2_ref, b2_ref))   # h2_layer
    h = act(dense(h, w3_ref, b3_ref))   # h3_layer
    h = act(dense(h, w4_ref, b4_ref))   # h4_layer
    o_ref[...] = dense(h, w5_ref, b5_ref).astype(o_ref.dtype)  # (TB/P, P)


def _is_wide_mxu_chip():
    """True on v6e / v7x (256-wide MXU, bf16 EUP); False on v5e/v5p/v4/unknown."""
    try:
        kind = jax.devices()[0].device_kind.lower()
    except Exception:
        return True
    return ("v6" in kind) or ("v7" in kind)


def pinn_net_forward(x, lb, ub, params, *, compute_dtype=None, pack=None,
                     tb_max=4096, min_grid_steps=2):
    """x: (B, 2); lb/ub: (2,) domain bounds; params: 6 x (W, b), W is (in, out)."""
    B = x.shape[0]
    NN = params[0][0].shape[1]

    wide = _is_wide_mxu_chip()
    if compute_dtype is None:
        compute_dtype = jnp.bfloat16          # bf16 MXU operands on all gens
    is_bf16 = np.dtype(compute_dtype) == np.dtype(jnp.bfloat16)
    tanh_dtype = jnp.bfloat16 if (is_bf16 and wide) else jnp.float32
    if pack is None:
        target = 256 if wide else 128         # MXU N width per chip
        pack = max(1, target // NN)
    P = int(pack)

    x = jnp.asarray(x, jnp.float32)
    lb = jnp.asarray(lb, jnp.float32).reshape(-1)
    ub = jnp.asarray(ub, jnp.float32).reshape(-1)

    # ---- Fold x1 = x*s + t into layer 0 (free at trace time) ----------------
    s = 2.0 / (ub - lb)
    t = -2.0 * lb / (ub - lb) - 1.0
    w0 = jnp.asarray(params[0][0], jnp.float32)
    b0 = jnp.asarray(params[0][1], jnp.float32).reshape(-1)
    layers = [(s[:, None] * w0, b0 + t @ w0)]
    layers += [(jnp.asarray(w, jnp.float32), jnp.asarray(b, jnp.float32).reshape(-1))
               for (w, b) in params[1:]]

    # ---- Lane-pack: block-diagonal weights + tiled biases --------------------
    # Wk' = kron(eye(P), Wk): P independent copies on the (block) diagonal, so
    # each packed lane-group of NN lanes carries one original batch row.
    eye = jnp.eye(P, dtype=jnp.float32)
    flat = []
    for (w, b) in layers:
        wp = jnp.kron(eye, w)                        # (in*P, out*P)
        bp = jnp.tile(b, P).reshape(1, -1)           # (1, out*P), stays f32
        flat.append(wp.astype(compute_dtype))        # MXU operands
        flat.append(bp)

    # ---- Batch tiling: pad to a multiple of TB, TB multiple of 32*P ----------
    unit = 32 * P                    # keeps (TB // P) sublane-safe for f32/bf16
    Bp_min = _round_up(max(B, 1), unit)
    steps = _cdiv(Bp_min, tb_max)
    if Bp_min >= min_grid_steps * unit:
        steps = max(steps, min_grid_steps)   # keep both v7x TensorCores busy
    TB = _round_up(_cdiv(Bp_min, steps), unit)
    Bp = TB * steps

    if Bp != B:
        x = jnp.pad(x, ((0, Bp - B), (0, 0)))
    # (Bp, 2) -> (Bp/P, 2P): P consecutive batch rows share one packed row.
    xp = x.reshape(Bp // P, 2 * P).astype(compute_dtype)

    rows = TB // P
    in_specs = [pl.BlockSpec((rows, 2 * P), lambda i: (i, 0))]
    # Weights/biases: constant index maps -> loaded once, VMEM-resident.
    in_specs += [pl.BlockSpec(a.shape, lambda i: (0, 0)) for a in flat]
    out_specs = pl.BlockSpec((rows, P), lambda i: (i, 0))

    NNP = NN * P
    param_bytes = sum(int(a.size) * a.dtype.itemsize for a in flat)
    cost = pl.CostEstimate(
        flops=2 * (Bp // P) * (2 * P * NNP + 4 * NNP * NNP + NNP * P),
        transcendentals=5 * Bp * NN,
        bytes_accessed=int(xp.size) * xp.dtype.itemsize + param_bytes + Bp * 4,
    )

    out = pl.pallas_call(
        functools.partial(_mlp_kernel, tanh_dtype=tanh_dtype),
        out_shape=jax.ShapeDtypeStruct((Bp // P, P), jnp.float32),
        grid=(steps,),
        in_specs=in_specs,
        out_specs=out_specs,
        compiler_params=pltpu.CompilerParams(dimension_semantics=("parallel",)),
        cost_estimate=cost,
    )(xp, *flat)

    # (Bp/P, P) row-major flatten == original batch order.
    return out.reshape(Bp, 1)[:B]


def init_params(key, NN):
    """PyTorch nn.Linear-style init (uniform +/- 1/sqrt(fan_in)); W as (in, out)."""
    dims = [(2, NN), (NN, NN), (NN, NN), (NN, NN), (NN, NN), (NN, 1)]
    params = []
    for (fan_in, fan_out) in dims:
        key, kw, kb = jax.random.split(key, 3)
        bound = 1.0 / math.sqrt(fan_in)
        w = jax.random.uniform(kw, (fan_in, fan_out), jnp.float32, -bound, bound)
        b = jax.random.uniform(kb, (fan_out,), jnp.float32, -bound, bound)
        params.append((w, b))
    return params


def reference_forward(x, lb, ub, params):
    x1 = 2.0 * (x - lb[None, :]) / (ub[None, :] - lb[None, :]) - 1.0
    h = x1
    for i, (w, b) in enumerate(params):
        h = h @ w + b[None, :]
        if i < len(params) - 1:
            h = jnp.tanh(h)
    return h


if __name__ == "__main__":
    NN = 32          # hidden width (same as the PyTorch module's `NN`)

    key = jax.random.PRNGKey(0)
    key, kx1, kx2 = jax.random.split(key, 3)

    # Allen-Cahn domain bounds: x in [-1, 1], t in [0, 1]
    lb = jnp.array([-1.0, 0.0], dtype=jnp.float32)
    ub = jnp.array([1.0, 1.0], dtype=jnp.float32)

    params = init_params(key, NN)

    # --- small smoke test, f32 path, tight tolerance --------------------------
    u = jax.random.uniform(kx1, (64, 2), jnp.float32)
    x_small = lb[None, :] + (ub - lb)[None, :] * u
    out = jax.block_until_ready(
        pinn_net_forward(x_small, lb, ub, params, compute_dtype=jnp.float32))
    ref = reference_forward(x_small, lb, ub, params)
    assert out.shape == (64, 1)
    assert jnp.allclose(out, ref, atol=1e-4, rtol=1e-4), "f32 small-batch mismatch"

    # --- larger batch: multi-tile grid + padding (2500 not a multiple of TB) --
    u = jax.random.uniform(kx2, (2500, 2), jnp.float32)
    x_big = lb[None, :] + (ub - lb)[None, :] * u
    ref_big = reference_forward(x_big, lb, ub, params)

    out_big = jax.block_until_ready(
        pinn_net_forward(x_big, lb, ub, params, compute_dtype=jnp.float32))
    assert out_big.shape == (2500, 1)
    assert jnp.allclose(out_big, ref_big, atol=1e-4, rtol=1e-4), "f32 big-batch mismatch"

    # --- explicit 4x packing path (128-wide, v5e-style) ------------------------
    out_p4 = jax.block_until_ready(
        pinn_net_forward(x_big, lb, ub, params, compute_dtype=jnp.float32, pack=4))
    assert jnp.allclose(out_p4, ref_big, atol=1e-4, rtol=1e-4), "pack=4 mismatch"

    # --- default fast path: bf16 MXU operands, bf16 tanh on v6e/v7x -----------
    out_fast = jax.block_until_ready(pinn_net_forward(x_big, lb, ub, params))
    assert out_fast.shape == (2500, 1)
    assert jnp.allclose(out_fast, ref_big, atol=1e-1, rtol=1e-1), "bf16 path mismatch"

    print("KERNEL_OK")
</pallas_src>

<mosaic_0001>
module attributes {stable_mosaic.version = 11 : i64} {
  func.func @_mlp_kernel(%arg0: i32, %arg1: memref<32x8xf32, #tpu.memory_space<vmem>>, %arg2: memref<8x128xf32, #tpu.memory_space<vmem>>, %arg3: memref<1x128xf32, #tpu.memory_space<vmem>>, %arg4: memref<128x128xf32, #tpu.memory_space<vmem>>, %arg5: memref<1x128xf32, #tpu.memory_space<vmem>>, %arg6: memref<128x128xf32, #tpu.memory_space<vmem>>, %arg7: memref<1x128xf32, #tpu.memory_space<vmem>>, %arg8: memref<128x128xf32, #tpu.memory_space<vmem>>, %arg9: memref<1x128xf32, #tpu.memory_space<vmem>>, %arg10: memref<128x128xf32, #tpu.memory_space<vmem>>, %arg11: memref<1x128xf32, #tpu.memory_space<vmem>>, %arg12: memref<128x4xf32, #tpu.memory_space<vmem>>, %arg13: memref<1x4xf32, #tpu.memory_space<vmem>>, %arg14: memref<32x4xf32, #tpu.memory_space<vmem>>) attributes {dimension_semantics = [#tpu.dimension_semantics<parallel>], iteration_bounds = array<i64: 1>, scalar_prefetch = 0 : i64, scratch_operands = 0 : i64, tpu.core_type = #tpu.core_type<tc>, window_params = [{transform_indices = @transform_0, window_bounds = array<i64: 32, 8>}, {pipeline_mode = #tpu.pipeline_mode<synchronous>, transform_indices = @transform_1, window_bounds = array<i64: 8, 128>}, {pipeline_mode = #tpu.pipeline_mode<synchronous>, transform_indices = @transform_2, window_bounds = array<i64: 1, 128>}, {pipeline_mode = #tpu.pipeline_mode<synchronous>, transform_indices = @transform_3, window_bounds = array<i64: 128, 128>}, {pipeline_mode = #tpu.pipeline_mode<synchronous>, transform_indices = @transform_4, window_bounds = array<i64: 1, 128>}, {pipeline_mode = #tpu.pipeline_mode<synchronous>, transform_indices = @transform_5, window_bounds = array<i64: 128, 128>}, {pipeline_mode = #tpu.pipeline_mode<synchronous>, transform_indices = @transform_6, window_bounds = array<i64: 1, 128>}, {pipeline_mode = #tpu.pipeline_mode<synchronous>, transform_indices = @transform_7, window_bounds = array<i64: 128, 128>}, {pipeline_mode = #tpu.pipeline_mode<synchronous>, transform_indices = @transform_8, window_bounds = array<i64: 1, 128>}, {pipeline_mode = #tpu.pipeline_mode<synchronous>, transform_indices = @transform_9, window_bounds = array<i64: 128, 128>}, {pipeline_mode = #tpu.pipeline_mode<synchronous>, transform_indices = @transform_10, window_bounds = array<i64: 1, 128>}, {pipeline_mode = #tpu.pipeline_mode<synchronous>, transform_indices = @transform_11, window_bounds = array<i64: 128, 4>}, {pipeline_mode = #tpu.pipeline_mode<synchronous>, transform_indices = @transform_12, window_bounds = array<i64: 1, 4>}, {transform_indices = @transform_13, window_bounds = array<i64: 32, 4>}]} {
    %c0 = arith.constant 0 : index
    %c0_0 = arith.constant 0 : index
    %0 = vector.load %arg1[%c0, %c0_0] : memref<32x8xf32, #tpu.memory_space<vmem>>, vector<32x8xf32>
    %c0_1 = arith.constant 0 : index
    %c0_2 = arith.constant 0 : index
    %1 = vector.load %arg2[%c0_1, %c0_2] : memref<8x128xf32, #tpu.memory_space<vmem>>, vector<8x128xf32>
    %cst = arith.constant dense<0.000000e+00> : vector<32x128xf32>
    %2 = tpu.matmul %0, %1, %cst {dimension_numbers = #tpu.dot_dimension_numbers<[1], [0], [0], [1], [0, 0, 1, 1], [], []>} : vector<32x8xf32>, vector<8x128xf32>, vector<32x128xf32> -> vector<32x128xf32>
    %c0_3 = arith.constant 0 : index
    %c0_4 = arith.constant 0 : index
    %3 = vector.load %arg3[%c0_3, %c0_4] : memref<1x128xf32, #tpu.memory_space<vmem>>, vector<1x128xf32>
    %4 = vector.broadcast %3 : vector<1x128xf32> to vector<32x128xf32>
    %5 = arith.addf %2, %4 : vector<32x128xf32>
    %6 = math.tanh %5 : vector<32x128xf32>
    %c0_5 = arith.constant 0 : index
    %c0_6 = arith.constant 0 : index
    %7 = vector.load %arg4[%c0_5, %c0_6] : memref<128x128xf32, #tpu.memory_space<vmem>>, vector<128x128xf32>
    %cst_7 = arith.constant dense<0.000000e+00> : vector<32x128xf32>
    %8 = tpu.matmul %6, %7, %cst_7 {dimension_numbers = #tpu.dot_dimension_numbers<[1], [0], [0], [1], [0, 0, 1, 1], [], []>} : vector<32x128xf32>, vector<128x128xf32>, vector<32x128xf32> -> vector<32x128xf32>
    %c0_8 = arith.constant 0 : index
    %c0_9 = arith.constant 0 : index
    %9 = vector.load %arg5[%c0_8, %c0_9] : memref<1x128xf32, #tpu.memory_space<vmem>>, vector<1x128xf32>
    %10 = vector.broadcast %9 : vector<1x128xf32> to vector<32x128xf32>
    %11 = arith.addf %8, %10 : vector<32x128xf32>
    %12 = math.tanh %11 : vector<32x128xf32>
    %c0_10 = arith.constant 0 : index
    %c0_11 = arith.constant 0 : index
    %13 = vector.load %arg6[%c0_10, %c0_11] : memref<128x128xf32, #tpu.memory_space<vmem>>, vector<128x128xf32>
    %cst_12 = arith.constant dense<0.000000e+00> : vector<32x128xf32>
    %14 = tpu.matmul %12, %13, %cst_12 {dimension_numbers = #tpu.dot_dimension_numbers<[1], [0], [0], [1], [0, 0, 1, 1], [], []>} : vector<32x128xf32>, vector<128x128xf32>, vector<32x128xf32> -> vector<32x128xf32>
    %c0_13 = arith.constant 0 : index
    %c0_14 = arith.constant 0 : index
    %15 = vector.load %arg7[%c0_13, %c0_14] : memref<1x128xf32, #tpu.memory_space<vmem>>, vector<1x128xf32>
    %16 = vector.broadcast %15 : vector<1x128xf32> to vector<32x128xf32>
    %17 = arith.addf %14, %16 : vector<32x128xf32>
    %18 = math.tanh %17 : vector<32x128xf32>
    %c0_15 = arith.constant 0 : index
    %c0_16 = arith.constant 0 : index
    %19 = vector.load %arg8[%c0_15, %c0_16] : memref<128x128xf32, #tpu.memory_space<vmem>>, vector<128x128xf32>
    %cst_17 = arith.constant dense<0.000000e+00> : vector<32x128xf32>
    %20 = tpu.matmul %18, %19, %cst_17 {dimension_numbers = #tpu.dot_dimension_numbers<[1], [0], [0], [1], [0, 0, 1, 1], [], []>} : vector<32x128xf32>, vector<128x128xf32>, vector<32x128xf32> -> vector<32x128xf32>
    %c0_18 = arith.constant 0 : index
    %c0_19 = arith.constant 0 : index
    %21 = vector.load %arg9[%c0_18, %c0_19] : memref<1x128xf32, #tpu.memory_space<vmem>>, vector<1x128xf32>
    %22 = vector.broadcast %21 : vector<1x128xf32> to vector<32x128xf32>
    %23 = arith.addf %20, %22 : vector<32x128xf32>
    %24 = math.tanh %23 : vector<32x128xf32>
    %c0_20 = arith.constant 0 : index
    %c0_21 = arith.constant 0 : index
    %25 = vector.load %arg10[%c0_20, %c0_21] : memref<128x128xf32, #tpu.memory_space<vmem>>, vector<128x128xf32>
    %cst_22 = arith.constant dense<0.000000e+00> : vector<32x128xf32>
    %26 = tpu.matmul %24, %25, %cst_22 {dimension_numbers = #tpu.dot_dimension_numbers<[1], [0], [0], [1], [0, 0, 1, 1], [], []>} : vector<32x128xf32>, vector<128x128xf32>, vector<32x128xf32> -> vector<32x128xf32>
    %c0_23 = arith.constant 0 : index
    %c0_24 = arith.constant 0 : index
    %27 = vector.load %arg11[%c0_23, %c0_24] : memref<1x128xf32, #tpu.memory_space<vmem>>, vector<1x128xf32>
    %28 = vector.broadcast %27 : vector<1x128xf32> to vector<32x128xf32>
    %29 = arith.addf %26, %28 : vector<32x128xf32>
    %30 = math.tanh %29 : vector<32x128xf32>
    %c0_25 = arith.constant 0 : index
    %c0_26 = arith.constant 0 : index
    %31 = vector.load %arg12[%c0_25, %c0_26] : memref<128x4xf32, #tpu.memory_space<vmem>>, vector<128x4xf32>
    %cst_27 = arith.constant dense<0.000000e+00> : vector<32x4xf32>
    %32 = tpu.matmul %30, %31, %cst_27 {dimension_numbers = #tpu.dot_dimension_numbers<[1], [0], [0], [1], [0, 0, 1, 1], [], []>} : vector<32x128xf32>, vector<128x4xf32>, vector<32x4xf32> -> vector<32x4xf32>
    %c0_28 = arith.constant 0 : index
    %c0_29 = arith.constant 0 : index
    %33 = vector.load %arg13[%c0_28, %c0_29] : memref<1x4xf32, #tpu.memory_space<vmem>>, vector<1x4xf32>
    %34 = vector.broadcast %33 : vector<1x4xf32> to vector<32x4xf32>
    %35 = arith.addf %32, %34 : vector<32x4xf32>
    %c0_30 = arith.constant 0 : index
    %c0_31 = arith.constant 0 : index
    %36 = vector.load %arg14[%c0_30, %c0_31] : memref<32x4xf32, #tpu.memory_space<vmem>>, vector<32x4xf32>
    tpu.vector_store %arg14[%c0_30, %c0_31], %35 {strides = array<i32>} : memref<32x4xf32, #tpu.memory_space<vmem>>, vector<32x4xf32>,
    return
  }
  func.func @transform_0(%arg0: i32) -> (i32, i32) {
    %c0_i32 = arith.constant 0 : i32
    %c0_i32_0 = arith.constant 0 : i32
    return %arg0, %c0_i32 : i32, i32
  }
  func.func @transform_1(%arg0: i32) -> (i32, i32) {
    %c0_i32 = arith.constant 0 : i32
    %c0_i32_0 = arith.constant 0 : i32
    %c0_i32_1 = arith.constant 0 : i32
    return %c0_i32, %c0_i32_0 : i32, i32
  }
  func.func @transform_2(%arg0: i32) -> (i32, i32) {
    %c0_i32 = arith.constant 0 : i32
    %c0_i32_0 = arith.constant 0 : i32
    %c0_i32_1 = arith.constant 0 : i32
    return %c0_i32, %c0_i32_0 : i32, i32
  }
  func.func @transform_3(%arg0: i32) -> (i32, i32) {
    %c0_i32 = arith.constant 0 : i32
    %c0_i32_0 = arith.constant 0 : i32
    %c0_i32_1 = arith.constant 0 : i32
    return %c0_i32, %c0_i32_0 : i32, i32
  }
  func.func @transform_4(%arg0: i32) -> (i32, i32) {
    %c0_i32 = arith.constant 0 : i32
    %c0_i32_0 = arith.constant 0 : i32
    %c0_i32_1 = arith.constant 0 : i32
    return %c0_i32, %c0_i32_0 : i32, i32
  }
  func.func @transform_5(%arg0: i32) -> (i32, i32) {
    %c0_i32 = arith.constant 0 : i32
    %c0_i32_0 = arith.constant 0 : i32
    %c0_i32_1 = arith.constant 0 : i32
    return %c0_i32, %c0_i32_0 : i32, i32
  }
  func.func @transform_6(%arg0: i32) -> (i32, i32) {
    %c0_i32 = arith.constant 0 : i32
    %c0_i32_0 = arith.constant 0 : i32
    %c0_i32_1 = arith.constant 0 : i32
    return %c0_i32, %c0_i32_0 : i32, i32
  }
  func.func @transform_7(%arg0: i32) -> (i32, i32) {
    %c0_i32 = arith.constant 0 : i32
    %c0_i32_0 = arith.constant 0 : i32
    %c0_i32_1 = arith.constant 0 : i32
    return %c0_i32, %c0_i32_0 : i32, i32
  }
  func.func @transform_8(%arg0: i32) -> (i32, i32) {
    %c0_i32 = arith.constant 0 : i32
    %c0_i32_0 = arith.constant 0 : i32
    %c0_i32_1 = arith.constant 0 : i32
    return %c0_i32, %c0_i32_0 : i32, i32
  }
  func.func @transform_9(%arg0: i32) -> (i32, i32) {
    %c0_i32 = arith.constant 0 : i32
    %c0_i32_0 = arith.constant 0 : i32
    %c0_i32_1 = arith.constant 0 : i32
    return %c0_i32, %c0_i32_0 : i32, i32
  }
  func.func @transform_10(%arg0: i32) -> (i32, i32) {
    %c0_i32 = arith.constant 0 : i32
    %c0_i32_0 = arith.constant 0 : i32
    %c0_i32_1 = arith.constant 0 : i32
    return %c0_i32, %c0_i32_0 : i32, i32
  }
  func.func @transform_11(%arg0: i32) -> (i32, i32) {
    %c0_i32 = arith.constant 0 : i32
    %c0_i32_0 = arith.constant 0 : i32
    %c0_i32_1 = arith.constant 0 : i32
    return %c0_i32, %c0_i32_0 : i32, i32
  }
  func.func @transform_12(%arg0: i32) -> (i32, i32) {
    %c0_i32 = arith.constant 0 : i32
    %c0_i32_0 = arith.constant 0 : i32
    %c0_i32_1 = arith.constant 0 : i32
    return %c0_i32, %c0_i32_0 : i32, i32
  }
  func.func @transform_13(%arg0: i32) -> (i32, i32) {
    %c0_i32 = arith.constant 0 : i32
    %c0_i32_0 = arith.constant 0 : i32
    return %arg0, %c0_i32 : i32, i32
  }
}

</mosaic_0001>

<llo_original>
// kernel: tpu_custom_call.1
$region0: #{tpu_custom_call.1}
  #allocation0 [shape = 'u32[]', space=smem, size = 0x4, offset = 0x4, fixed_abs, tag = 'smem constant byte address 0x4 - core index']
  #allocation1 [shape = 'u32[144,128]{1,0:T(1,128)}', space=vmem, size = 0x12000, scoped, tag = 'internal scratch']
  %s0 = inlined_call_operand.vmem [shape: f32[32,8], index: 0, kind: input, shape index: {}]
  %s1 = inlined_call_operand.vmem [shape: f32[8,128], index: 1, kind: input, shape index: {}]
  %s2 = inlined_call_operand.vmem [shape: f32[1,128], index: 2, kind: input, shape index: {}]
  %s3 = inlined_call_operand.vmem [shape: f32[128,128], index: 3, kind: input, shape index: {}]
  %s4 = inlined_call_operand.vmem [shape: f32[1,128], index: 4, kind: input, shape index: {}]
  %s5 = inlined_call_operand.hbm [shape: f32[128,128], index: 5, kind: input, shape index: {}]
  %s6 = inlined_call_operand.vmem [shape: f32[1,128], index: 6, kind: input, shape index: {}]
  %s7 = inlined_call_operand.hbm [shape: f32[128,128], index: 7, kind: input, shape index: {}]
  %s8 = inlined_call_operand.vmem [shape: f32[1,128], index: 8, kind: input, shape index: {}]
  %s9 = inlined_call_operand.hbm [shape: f32[128,128], index: 9, kind: input, shape index: {}]
  %s10 = inlined_call_operand.vmem [shape: f32[1,128], index: 10, kind: input, shape index: {}]
  %s11 = inlined_call_operand.vmem [shape: f32[128,4], index: 11, kind: input, shape index: {}]
  %s12 = inlined_call_operand.vmem [shape: f32[1,4], index: 12, kind: input, shape index: {}]
  %s13 = inlined_call_operand.vmem [shape: f32[32,4], index: 13, kind: output, shape index: {}]
  %s14 = sld [smem:[#allocation0]]
  $region74: #{tpu_custom_call.1} parent=0
    _
  %s16 = ssub.s32 1, %s14
  %s17 = scalar_select 0, %s16, %s14
  $region1: #{tpu_custom_call.1} parent=0
    #allocation2 [shape = 'u8[65536]{0}', space=vmem, size = 0x10000, scoped, tag = 'input window, operand 5, single buffered']
    #allocation3 [shape = 's32[1]{0}', space=sflag, size = 0x4, scoped, tag = 'scoped memory for tpu_custom_call.1']
    #allocation4 [shape = 'u8[65536]{0}', space=vmem, size = 0x10000, scoped, tag = 'input window, operand 7, single buffered']
    #allocation5 [shape = 's32[1]{0}', space=sflag, size = 0x4, scoped, tag = 'scoped memory for tpu_custom_call.1']
    #allocation6 [shape = 'u8[65536]{0}', space=vmem, size = 0x10000, scoped, tag = 'input window, operand 9, single buffered']
    %18 = vsyncpa [#allocation3], 0
    %19 = vsyncpa [#allocation5], 0
    // Predicated region
    $region2: #{tpu_custom_call.1} parent=1 // pred_check
      _
    $region3: #{tpu_custom_call.1} parent=1 // pred_check_branch
      %21 = sbr.rel (0) target = $region5
    $region4: #{tpu_custom_call.1} parent=1 // pred_region
      _
    $region5: #{tpu_custom_call.1} parent=1 // pred_fallthru
      _
    // Predicated region
    $region6: #{tpu_custom_call.1} parent=1 // pred_check
      _
    $region7: #{tpu_custom_call.1} parent=1 // pred_check_branch
      %23 = sbr.rel (0) target = $region9
    $region8: #{tpu_custom_call.1} parent=1 // pred_region
      _
    $region9: #{tpu_custom_call.1} parent=1 // pred_fallthru
      _
    // Predicated region
    $region10: #{tpu_custom_call.1} parent=1 // pred_check
      _
    $region11: #{tpu_custom_call.1} parent=1 // pred_check_branch
      %25 = sbr.rel (0) target = $region13
    $region12: #{tpu_custom_call.1} parent=1 // pred_region
      _
    $region13: #{tpu_custom_call.1} parent=1 // pred_fallthru
      _
    // Predicated region
    $region14: #{tpu_custom_call.1} parent=1 // pred_check
      _
    $region15: #{tpu_custom_call.1} parent=1 // pred_check_branch
      %27 = sbr.rel (0) target = $region17
    $region16: #{tpu_custom_call.1} parent=1 // pred_region
      _
    $region17: #{tpu_custom_call.1} parent=1 // pred_fallthru
      _
    // Predicated region
    $region18: #{tpu_custom_call.1} parent=1 // pred_check
      _
    $region19: #{tpu_custom_call.1} parent=1 // pred_check_branch
      %29 = sbr.rel (0) target = $region21
    $region20: #{tpu_custom_call.1} parent=1 // pred_region
      _
    $region21: #{tpu_custom_call.1} parent=1 // pred_fallthru
      _
    // Predicated region
    $region22: #{tpu_custom_call.1} parent=1 // pred_check
      _
    $region23: #{tpu_custom_call.1} parent=1 // pred_check_branch
      %31 = sbr.rel (0) target = $region25
    $region24: #{tpu_custom_call.1} parent=1 // pred_region
      %s33 = ssub.s32 2048, 2048
      %34 = vsyncadd [#allocation3], %s33
      %s35 = sshll.u32 [#allocation2], 4
      %s36 = int_to_ptr.vmem [resolvable:$true] %s35
      %41 = dma.hbm_to_vmem [thread:$0]  %s5, 2048, %s36, [#allocation3], 128, 128, 8
    $region25: #{tpu_custom_call.1} parent=1 // pred_fallthru
      _
    // Predicated region
    $region26: #{tpu_custom_call.1} parent=1 // pred_check
      _
    $region27: #{tpu_custom_call.1} parent=1 // pred_check_branch
      %43 = sbr.rel (0) target = $region29
    $region28: #{tpu_custom_call.1} parent=1 // pred_region
      _
    $region29: #{tpu_custom_call.1} parent=1 // pred_fallthru
      _
    // Predicated region
    $region30: #{tpu_custom_call.1} parent=1 // pred_check
      _
    $region31: #{tpu_custom_call.1} parent=1 // pred_check_branch
      %45 = sbr.rel (0) target = $region33
    $region32: #{tpu_custom_call.1} parent=1 // pred_region
      %s47 = ssub.s32 2048, 2048
      %48 = vsyncadd [#allocation5], %s47
      %s49 = sshll.u32 [#allocation4], 4
      %s50 = int_to_ptr.vmem [resolvable:$true] %s49
      %55 = dma.hbm_to_vmem [thread:$0]  %s7, 2048, %s50, [#allocation5], 128, 128, 8
    $region33: #{tpu_custom_call.1} parent=1 // pred_fallthru
      _
    // Predicated region
    $region34: #{tpu_custom_call.1} parent=1 // pred_check
      _
    $region35: #{tpu_custom_call.1} parent=1 // pred_check_branch
      %57 = sbr.rel (0) target = $region37
    $region36: #{tpu_custom_call.1} parent=1 // pred_region
      _
    $region37: #{tpu_custom_call.1} parent=1 // pred_fallthru
      _
    // Predicated region
    $region38: #{tpu_custom_call.1} parent=1 // pred_check
      _
    $region39: #{tpu_custom_call.1} parent=1 // pred_check_branch
      %59 = sbr.rel (0) target = $region41
    $region40: #{tpu_custom_call.1} parent=1 // pred_region
      %s61 = ssub.s32 2048, 2048
      %62 = vsyncadd [#allocation5], %s61
      %s63 = sshll.u32 [#allocation6], 4
      %s64 = int_to_ptr.vmem [resolvable:$true] %s63
      %69 = dma.hbm_to_vmem [thread:$0]  %s9, 2048, %s64, [#allocation5], 128, 128, 8
    $region41: #{tpu_custom_call.1} parent=1 // pred_fallthru
      _
    // Predicated region
    $region42: #{tpu_custom_call.1} parent=1 // pred_check
      _
    $region43: #{tpu_custom_call.1} parent=1 // pred_check_branch
      %71 = sbr.rel (0) target = $region45
    $region44: #{tpu_custom_call.1} parent=1 // pred_region
      _
    $region45: #{tpu_custom_call.1} parent=1 // pred_fallthru
      _
    // Predicated region
    $region46: #{tpu_custom_call.1} parent=1 // pred_check
      _
    $region47: #{tpu_custom_call.1} parent=1 // pred_check_branch
      %73 = sbr.rel (0) target = $region49
    $region48: #{tpu_custom_call.1} parent=1 // pred_region
      _
    $region49: #{tpu_custom_call.1} parent=1 // pred_fallthru
      _
    // Predicated region
    $region50: #{tpu_custom_call.1} parent=1 // pred_check
      _
    $region51: #{tpu_custom_call.1} parent=1 // pred_check_branch
      %75 = sbr.rel (0) target = $region53
    $region52: #{tpu_custom_call.1} parent=1 // pred_region
      _
    $region53: #{tpu_custom_call.1} parent=1 // pred_fallthru
      _
    // Predicated region
    $region54: #{tpu_custom_call.1} parent=1 // pred_check
      _
    $region55: #{tpu_custom_call.1} parent=1 // pred_check_branch
      %77 = sbr.rel (0) target = $region57
    $region56: #{tpu_custom_call.1} parent=1 // pred_region
      %78 = dma.done [#allocation3], 2048
    $region57: #{tpu_custom_call.1} parent=1 // pred_fallthru
      _
    // Predicated region
    $region58: #{tpu_custom_call.1} parent=1 // pred_check
      _
    $region59: #{tpu_custom_call.1} parent=1 // pred_check_branch
      %80 = sbr.rel (0) target = $region61
    $region60: #{tpu_custom_call.1} parent=1 // pred_region
      %81 = dma.done [#allocation5], 2048
    $region61: #{tpu_custom_call.1} parent=1 // pred_fallthru
      _
    // Predicated region
    $region62: #{tpu_custom_call.1} parent=1 // pred_check
      _
    $region63: #{tpu_custom_call.1} parent=1 // pred_check_branch
      %83 = sbr.rel (0) target = $region65
    $region64: #{tpu_custom_call.1} parent=1 // pred_region
      %84 = dma.done [#allocation5], 2048
    $region65: #{tpu_custom_call.1} parent=1 // pred_fallthru
      _
    %v85 = vld [vmem:[%s0] sm:$0xff]
    %v86 = vld [vmem:[%s0 + $0x8] sm:$0xff]
    %v87 = vld [vmem:[%s0 + $0x10] sm:$0xff]
    %v88 = vld [vmem:[%s0 + $0x18] sm:$0xff]
    %v89 = vld [vmem:[%s1] sm:$0xff]
    %v90 = vld [vmem:[%s2] sm:$0x1]
    %v92 = vlaneseq
    %v93 = vshrl.u32 %v92, 7
    %v94 = vsub.s32 0, %v93
    %v95 = vrot.slane %v90, %v94
    %vm97 = vcmask 64512
    %v99 = vsel %vm97, %v85, 0
    %v102 = vsel %vm97, %v86, 0
    %v105 = vsel %vm97, %v87, 0
    %v108 = vsel %vm97, %v88, 0
    %110 = vmatprep.subr.mxu0 0.0
    %111 = vmatpush1.msra.mxu0 %v89
    %112 = vmatprep.subr.mxu0 0.0
    %113 = vmatpush1.msra.mxu0 0.0
    %114 = vmatprep.subr.mxu0 0.0
    %115 = vmatpush1.msra.mxu0 0.0
    %116 = vmatprep.subr.mxu0 0.0
    %117 = vmatpush1.msra.mxu0 0.0
    %118 = vmatprep.subr.mxu0 0.0
    %119 = vmatpush1.msra.mxu0 0.0
    %120 = vmatprep.subr.mxu0 0.0
    %121 = vmatpush1.msra.mxu0 0.0
    %122 = vmatprep.subr.mxu0 0.0
    %123 = vmatpush1.msra.mxu0 0.0
    %124 = vmatprep.subr.mxu0 0.0
    %125 = vmatpush1.msra.mxu0 0.0
    %126 = vmatprep.subr.mxu0 0.0
    %127 = vmatpush1.msra.mxu0 0.0
    %128 = vmatprep.subr.mxu0 0.0
    %129 = vmatpush1.msra.mxu0 0.0
    %130 = vmatprep.subr.mxu0 0.0
    %131 = vmatpush1.msra.mxu0 0.0
    %132 = vmatprep.subr.mxu0 0.0
    %133 = vmatpush1.msra.mxu0 0.0
    %134 = vmatprep.subr.mxu0 0.0
    %135 = vmatpush1.msra.mxu0 0.0
    %136 = vmatprep.subr.mxu0 0.0
    %137 = vmatpush1.msra.mxu0 0.0
    %138 = vmatprep.subr.mxu0 0.0
    %139 = vmatpush1.msra.mxu0 0.0
    %140 = vmatprep.subr.mxu0 0.0
    %141 = vmatpush1.msra.mxu0 0.0
    %142 = vmatprep.subr.mxu0 0.0
    %143 = vmatpush1.msra.mxu0 0.0
    %144 = vmatprep.subr.mxu0 0.0
    %145 = vmatpush1.msra.mxu0 0.0
    %146 = vmatprep.subr.mxu0 0.0
    %147 = vmatpush1.msra.mxu0 0.0
    %148 = vmatprep.subr.mxu0 0.0
    %149 = vmatpush1.msra.mxu0 0.0
    %150 = vmatprep.subr.mxu0 0.0
    %151 = vmatpush1.msra.mxu0 0.0
    %152 = vmatprep.subr.mxu0 0.0
    %153 = vmatpush1.msra.mxu0 0.0
    %154 = vmatprep.subr.mxu0 0.0
    %155 = vmatpush1.msra.mxu0 0.0
    %156 = vmatprep.subr.mxu0 0.0
    %157 = vmatpush1.msra.mxu0 0.0
    %158 = vmatprep.subr.mxu0 0.0
    %159 = vmatpush1.msra.mxu0 0.0
    %160 = vmatprep.subr.mxu0 0.0
    %161 = vmatpush1.msra.mxu0 0.0
    %162 = vmatprep.subr.mxu0 0.0
    %163 = vmatpush1.msra.mxu0 0.0
    %164 = vmatprep.subr.mxu0 0.0
    %165 = vmatpush1.msra.mxu0 0.0
    %166 = vmatprep.subr.mxu0 0.0
    %167 = vmatpush1.msra.mxu0 0.0
    %168 = vmatprep.subr.mxu0 0.0
    %169 = vmatpush1.msra.mxu0 0.0
    %170 = vmatprep.subr.mxu0 0.0
    %171 = vmatpush1.msra.mxu0 0.0
    %172 = vmatprep.subr.mxu0 0.0
    %173 = vmatpush1.msra.mxu0 0.0
    %174 = vmatprep.mubr.f32.mxu0 0.0
    %175 = vmatmul.mubr.f32.gmra.mrb[0].mxu0 %v99
    %v176 = vpop.f32.mrb[0].mxu0
    %v177 = vadd.f32 %v95, %v176
    %v178 = vpop.f32.mrb[0].mxu0
    %179 = vmatprep.mubr.f32.mxu0 0.0
    %180 = vmatmul.mubr.f32.gmra.mrb[0].mxu0 %v102
    %v181 = vpop.f32.mrb[0].mxu0
    %v182 = vadd.f32 %v95, %v181
    %v183 = vpop.f32.mrb[0].mxu0
    %184 = vmatprep.mubr.f32.mxu0 0.0
    %185 = vmatmul.mubr.f32.gmra.mrb[0].mxu0 %v105
    %v186 = vpop.f32.mrb[0].mxu0
    %v187 = vadd.f32 %v95, %v186
    %v188 = vpop.f32.mrb[0].mxu0
    %189 = vmatprep.mubr.f32.mxu0 0.0
    %190 = vmatmul.mubr.f32.gmra.mrb[0].mxu0 %v108
    %v191 = vpop.f32.mrb[0].mxu0
    %v192 = vadd.f32 %v95, %v191
    %v193 = vpop.f32.mrb[0].mxu0
    %194 = vdwg.mxu0
    %v195 = vtanh.pop %v177
    %v196 = vtanh.pop %v182
    %v197 = vtanh.pop %v187
    %v198 = vtanh.pop %v192
    %v199 = vld [vmem:[%s3] sm:$0xff]
    %v200 = vld [vmem:[%s3 + $0x8] sm:$0xff]
    %v201 = vld [vmem:[%s3 + $0x10] sm:$0xff]
    %v202 = vld [vmem:[%s3 + $0x18] sm:$0xff]
    %v203 = vld [vmem:[%s3 + $0x20] sm:$0xff]
    %v204 = vld [vmem:[%s3 + $0x28] sm:$0xff]
    %v205 = vld [vmem:[%s3 + $0x30] sm:$0xff]
    %v206 = vld [vmem:[%s3 + $0x38] sm:$0xff]
    %v207 = vld [vmem:[%s3 + $0x40] sm:$0xff]
    %v208 = vld [vmem:[%s3 + $0x48] sm:$0xff]
    %v209 = vld [vmem:[%s3 + $0x50] sm:$0xff]
    %v210 = vld [vmem:[%s3 + $0x58] sm:$0xff]
    %v211 = vld [vmem:[%s3 + $0x60] sm:$0xff]
    %v212 = vld [vmem:[%s3 + $0x68] sm:$0xff]
    %v213 = vld [vmem:[%s3 + $0x70] sm:$0xff]
    %v214 = vld [vmem:[%s3 + $0x78] sm:$0xff]
    %v215 = vld [vmem:[%s4] sm:$0x1]
    %v217 = vlaneseq
    %v218 = vshrl.u32 %v217, 7
    %v219 = vsub.s32 0, %v218
    %v220 = vrot.slane %v215, %v219
    %222 = vmatprep.subr.mxu0 0.0
    %223 = vmatpush1.msra.mxu0 %v199
    %224 = vmatprep.subr.mxu0 0.0
    %225 = vmatpush1.msra.mxu0 %v200
    %226 = vmatprep.subr.mxu0 0.0
    %227 = vmatpush1.msra.mxu0 %v201
    %228 = vmatprep.subr.mxu0 0.0
    %229 = vmatpush1.msra.mxu0 %v202
    %230 = vmatprep.subr.mxu0 0.0
    %231 = vmatpush1.msra.mxu0 %v203
    %232 = vmatprep.subr.mxu0 0.0
    %233 = vmatpush1.msra.mxu0 %v204
    %234 = vmatprep.subr.mxu0 0.0
    %235 = vmatpush1.msra.mxu0 %v205
    %236 = vmatprep.subr.mxu0 0.0
    %237 = vmatpush1.msra.mxu0 %v206
    %238 = vmatprep.subr.mxu0 0.0
    %239 = vmatpush1.msra.mxu0 %v207
    %240 = vmatprep.subr.mxu0 0.0
    %241 = vmatpush1.msra.mxu0 %v208
    %242 = vmatprep.subr.mxu0 0.0
    %243 = vmatpush1.msra.mxu0 %v209
    %244 = vmatprep.subr.mxu0 0.0
    %245 = vmatpush1.msra.mxu0 %v210
    %246 = vmatprep.subr.mxu0 0.0
    %247 = vmatpush1.msra.mxu0 %v211
    %248 = vmatprep.subr.mxu0 0.0
    %249 = vmatpush1.msra.mxu0 %v212
    %250 = vmatprep.subr.mxu0 0.0
    %251 = vmatpush1.msra.mxu0 %v213
    %252 = vmatprep.subr.mxu0 0.0
    %253 = vmatpush1.msra.mxu0 %v214
    %254 = vmatprep.subr.mxu0 0.0
    %255 = vmatpush1.msra.mxu0 0.0
    %256 = vmatprep.subr.mxu0 0.0
    %257 = vmatpush1.msra.mxu0 0.0
    %258 = vmatprep.subr.mxu0 0.0
    %259 = vmatpush1.msra.mxu0 0.0
    %260 = vmatprep.subr.mxu0 0.0
    %261 = vmatpush1.msra.mxu0 0.0
    %262 = vmatprep.subr.mxu0 0.0
    %263 = vmatpush1.msra.mxu0 0.0
    %264 = vmatprep.subr.mxu0 0.0
    %265 = vmatpush1.msra.mxu0 0.0
    %266 = vmatprep.subr.mxu0 0.0
    %267 = vmatpush1.msra.mxu0 0.0
    %268 = vmatprep.subr.mxu0 0.0
    %269 = vmatpush1.msra.mxu0 0.0
    %270 = vmatprep.subr.mxu0 0.0
    %271 = vmatpush1.msra.mxu0 0.0
    %272 = vmatprep.subr.mxu0 0.0
    %273 = vmatpush1.msra.mxu0 0.0
    %274 = vmatprep.subr.mxu0 0.0
    %275 = vmatpush1.msra.mxu0 0.0
    %276 = vmatprep.subr.mxu0 0.0
    %277 = vmatpush1.msra.mxu0 0.0
    %278 = vmatprep.subr.mxu0 0.0
    %279 = vmatpush1.msra.mxu0 0.0
    %280 = vmatprep.subr.mxu0 0.0
    %281 = vmatpush1.msra.mxu0 0.0
    %282 = vmatprep.subr.mxu0 0.0
    %283 = vmatpush1.msra.mxu0 0.0
    %284 = vmatprep.subr.mxu0 0.0
    %285 = vmatpush1.msra.mxu0 0.0
    %286 = vmatprep.mubr.f32.mxu0 0.0
    %287 = vmatmul.mubr.f32.gmra.mrb[0].mxu0 %v195
    %v288 = vpop.f32.mrb[0].mxu0
    %v289 = vadd.f32 %v220, %v288
    %v290 = vpop.f32.mrb[0].mxu0
    %291 = vmatprep.mubr.f32.mxu0 0.0
    %292 = vmatmul.mubr.f32.gmra.mrb[0].mxu0 %v196
    %v293 = vpop.f32.mrb[0].mxu0
    %v294 = vadd.f32 %v220, %v293
    %v295 = vpop.f32.mrb[0].mxu0
    %296 = vmatprep.mubr.f32.mxu0 0.0
    %297 = vmatmul.mubr.f32.gmra.mrb[0].mxu0 %v197
    %v298 = vpop.f32.mrb[0].mxu0
    %v299 = vadd.f32 %v220, %v298
    %v300 = vpop.f32.mrb[0].mxu0
    %301 = vmatprep.mubr.f32.mxu0 0.0
    %302 = vmatmul.mubr.f32.gmra.mrb[0].mxu0 %v198
    %v303 = vpop.f32.mrb[0].mxu0
    %v304 = vadd.f32 %v220, %v303
    %v305 = vpop.f32.mrb[0].mxu0
    %306 = vdwg.mxu0
    %v307 = vtanh.pop %v289
    %v308 = vtanh.pop %v294
    %v309 = vtanh.pop %v299
    %v310 = vtanh.pop %v304
    %v311 = vld [vmem:[#allocation2] sm:$0xff]
    %v312 = vld [vmem:[#allocation2 + $0x8] sm:$0xff]
    %v313 = vld [vmem:[#allocation2 + $0x10] sm:$0xff]
    %v314 = vld [vmem:[#allocation2 + $0x18] sm:$0xff]
    %v315 = vld [vmem:[#allocation2 + $0x20] sm:$0xff]
    %v316 = vld [vmem:[#allocation2 + $0x28] sm:$0xff]
    %v317 = vld [vmem:[#allocation2 + $0x30] sm:$0xff]
    %v318 = vld [vmem:[#allocation2 + $0x38] sm:$0xff]
    %v319 = vld [vmem:[#allocation2 + $0x40] sm:$0xff]
    %v320 = vld [vmem:[#allocation2 + $0x48] sm:$0xff]
    %v321 = vld [vmem:[#allocation2 + $0x50] sm:$0xff]
    %v322 = vld [vmem:[#allocation2 + $0x58] sm:$0xff]
    %v323 = vld [vmem:[#allocation2 + $0x60] sm:$0xff]
    %v324 = vld [vmem:[#allocation2 + $0x68] sm:$0xff]
    %v325 = vld [vmem:[#allocation2 + $0x70] sm:$0xff]
    %v326 = vld [vmem:[#allocation2 + $0x78] sm:$0xff]
    %v327 = vld [vmem:[%s6] sm:$0x1]
    %v329 = vlaneseq
    %v330 = vshrl.u32 %v329, 7
    %v331 = vsub.s32 0, %v330
    %v332 = vrot.slane %v327, %v331
    %334 = vmatprep.subr.mxu0 0.0
    %335 = vmatpush1.msra.mxu0 %v311
    %336 = vmatprep.subr.mxu0 0.0
    %337 = vmatpush1.msra.mxu0 %v312
    %338 = vmatprep.subr.mxu0 0.0
    %339 = vmatpush1.msra.mxu0 %v313
    %340 = vmatprep.subr.mxu0 0.0
    %341 = vmatpush1.msra.mxu0 %v314
    %342 = vmatprep.subr.mxu0 0.0
    %343 = vmatpush1.msra.mxu0 %v315
    %344 = vmatprep.subr.mxu0 0.0
    %345 = vmatpush1.msra.mxu0 %v316
    %346 = vmatprep.subr.mxu0 0.0
    %347 = vmatpush1.msra.mxu0 %v317
    %348 = vmatprep.subr.mxu0 0.0
    %349 = vmatpush1.msra.mxu0 %v318
    %350 = vmatprep.subr.mxu0 0.0
    %351 = vmatpush1.msra.mxu0 %v319
    %352 = vmatprep.subr.mxu0 0.0
    %353 = vmatpush1.msra.mxu0 %v320
    %354 = vmatprep.subr.mxu0 0.0
    %355 = vmatpush1.msra.mxu0 %v321
    %356 = vmatprep.subr.mxu0 0.0
    %357 = vmatpush1.msra.mxu0 %v322
    %358 = vmatprep.subr.mxu0 0.0
    %359 = vmatpush1.msra.mxu0 %v323
    %360 = vmatprep.subr.mxu0 0.0
    %361 = vmatpush1.msra.mxu0 %v324
    %362 = vmatprep.subr.mxu0 0.0
    %363 = vmatpush1.msra.mxu0 %v325
    %364 = vmatprep.subr.mxu0 0.0
    %365 = vmatpush1.msra.mxu0 %v326
    %366 = vmatprep.subr.mxu0 0.0
    %367 = vmatpush1.msra.mxu0 0.0
    %368 = vmatprep.subr.mxu0 0.0
    %369 = vmatpush1.msra.mxu0 0.0
    %370 = vmatprep.subr.mxu0 0.0
    %371 = vmatpush1.msra.mxu0 0.0
    %372 = vmatprep.subr.mxu0 0.0
    %373 = vmatpush1.msra.mxu0 0.0
    %374 = vmatprep.subr.mxu0 0.0
    %375 = vmatpush1.msra.mxu0 0.0
    %376 = vmatprep.subr.mxu0 0.0
    %377 = vmatpush1.msra.mxu0 0.0
    %378 = vmatprep.subr.mxu0 0.0
    %379 = vmatpush1.msra.mxu0 0.0
    %380 = vmatprep.subr.mxu0 0.0
    %381 = vmatpush1.msra.mxu0 0.0
    %382 = vmatprep.subr.mxu0 0.0
    %383 = vmatpush1.msra.mxu0 0.0
    %384 = vmatprep.subr.mxu0 0.0
    %385 = vmatpush1.msra.mxu0 0.0
    %386 = vmatprep.subr.mxu0 0.0
    %387 = vmatpush1.msra.mxu0 0.0
    %388 = vmatprep.subr.mxu0 0.0
    %389 = vmatpush1.msra.mxu0 0.0
    %390 = vmatprep.subr.mxu0 0.0
    %391 = vmatpush1.msra.mxu0 0.0
    %392 = vmatprep.subr.mxu0 0.0
    %393 = vmatpush1.msra.mxu0 0.0
    %394 = vmatprep.subr.mxu0 0.0
    %395 = vmatpush1.msra.mxu0 0.0
    %396 = vmatprep.subr.mxu0 0.0
    %397 = vmatpush1.msra.mxu0 0.0
    %398 = vmatprep.mubr.f32.mxu0 0.0
    %399 = vmatmul.mubr.f32.gmra.mrb[0].mxu0 %v307
    %v400 = vpop.f32.mrb[0].mxu0
    %v401 = vadd.f32 %v332, %v400
    %v402 = vpop.f32.mrb[0].mxu0
    %403 = vmatprep.mubr.f32.mxu0 0.0
    %404 = vmatmul.mubr.f32.gmra.mrb[0].mxu0 %v308
    %v405 = vpop.f32.mrb[0].mxu0
    %v406 = vadd.f32 %v332, %v405
    %v407 = vpop.f32.mrb[0].mxu0
    %408 = vmatprep.mubr.f32.mxu0 0.0
    %409 = vmatmul.mubr.f32.gmra.mrb[0].mxu0 %v309
    %v410 = vpop.f32.mrb[0].mxu0
    %v411 = vadd.f32 %v332, %v410
    %v412 = vpop.f32.mrb[0].mxu0
    %413 = vmatprep.mubr.f32.mxu0 0.0
    %414 = vmatmul.mubr.f32.gmra.mrb[0].mxu0 %v310
    %v415 = vpop.f32.mrb[0].mxu0
    %v416 = vadd.f32 %v332, %v415
    %v417 = vpop.f32.mrb[0].mxu0
    %418 = vdwg.mxu0
    %v419 = vtanh.pop %v401
    %v420 = vtanh.pop %v406
    %v421 = vtanh.pop %v411
    %v422 = vtanh.pop %v416
    %v423 = vld [vmem:[#allocation4] sm:$0xff]
    %v424 = vld [vmem:[#allocation4 + $0x8] sm:$0xff]
    %v425 = vld [vmem:[#allocation4 + $0x10] sm:$0xff]
    %v426 = vld [vmem:[#allocation4 + $0x18] sm:$0xff]
    %v427 = vld [vmem:[#allocation4 + $0x20] sm:$0xff]
    %v428 = vld [vmem:[#allocation4 + $0x28] sm:$0xff]
    %v429 = vld [vmem:[#allocation4 + $0x30] sm:$0xff]
    %v430 = vld [vmem:[#allocation4 + $0x38] sm:$0xff]
    %v431 = vld [vmem:[#allocation4 + $0x40] sm:$0xff]
    %v432 = vld [vmem:[#allocation4 + $0x48] sm:$0xff]
    %v433 = vld [vmem:[#allocation4 + $0x50] sm:$0xff]
    %v434 = vld [vmem:[#allocation4 + $0x58] sm:$0xff]
    %v435 = vld [vmem:[#allocation4 + $0x60] sm:$0xff]
    %v436 = vld [vmem:[#allocation4 + $0x68] sm:$0xff]
    %v437 = vld [vmem:[#allocation4 + $0x70] sm:$0xff]
    %v438 = vld [vmem:[#allocation4 + $0x78] sm:$0xff]
    %v439 = vld [vmem:[%s8] sm:$0x1]
    %v441 = vlaneseq
    %v442 = vshrl.u32 %v441, 7
    %v443 = vsub.s32 0, %v442
    %v444 = vrot.slane %v439, %v443
    %446 = vmatprep.subr.mxu0 0.0
    %447 = vmatpush1.msra.mxu0 %v423
    %448 = vmatprep.subr.mxu0 0.0
    %449 = vmatpush1.msra.mxu0 %v424
    %450 = vmatprep.subr.mxu0 0.0
    %451 = vmatpush1.msra.mxu0 %v425
    %452 = vmatprep.subr.mxu0 0.0
    %453 = vmatpush1.msra.mxu0 %v426
    %454 = vmatprep.subr.mxu0 0.0
    %455 = vmatpush1.msra.mxu0 %v427
    %456 = vmatprep.subr.mxu0 0.0
    %457 = vmatpush1.msra.mxu0 %v428
    %458 = vmatprep.subr.mxu0 0.0
    %459 = vmatpush1.msra.mxu0 %v429
    %460 = vmatprep.subr.mxu0 0.0
    %461 = vmatpush1.msra.mxu0 %v430
    %462 = vmatprep.subr.mxu0 0.0
    %463 = vmatpush1.msra.mxu0 %v431
    %464 = vmatprep.subr.mxu0 0.0
    %465 = vmatpush1.msra.mxu0 %v432
    %466 = vmatprep.subr.mxu0 0.0
    %467 = vmatpush1.msra.mxu0 %v433
    %468 = vmatprep.subr.mxu0 0.0
    %469 = vmatpush1.msra.mxu0 %v434
    %470 = vmatprep.subr.mxu0 0.0
    %471 = vmatpush1.msra.mxu0 %v435
    %472 = vmatprep.subr.mxu0 0.0
    %473 = vmatpush1.msra.mxu0 %v436
    %474 = vmatprep.subr.mxu0 0.0
    %475 = vmatpush1.msra.mxu0 %v437
    %476 = vmatprep.subr.mxu0 0.0
    %477 = vmatpush1.msra.mxu0 %v438
    %478 = vmatprep.subr.mxu0 0.0
    %479 = vmatpush1.msra.mxu0 0.0
    %480 = vmatprep.subr.mxu0 0.0
    %481 = vmatpush1.msra.mxu0 0.0
    %482 = vmatprep.subr.mxu0 0.0
    %483 = vmatpush1.msra.mxu0 0.0
    %484 = vmatprep.subr.mxu0 0.0
    %485 = vmatpush1.msra.mxu0 0.0
    %486 = vmatprep.subr.mxu0 0.0
    %487 = vmatpush1.msra.mxu0 0.0
    %488 = vmatprep.subr.mxu0 0.0
    %489 = vmatpush1.msra.mxu0 0.0
    %490 = vmatprep.subr.mxu0 0.0
    %491 = vmatpush1.msra.mxu0 0.0
    %492 = vmatprep.subr.mxu0 0.0
    %493 = vmatpush1.msra.mxu0 0.0
    %494 = vmatprep.subr.mxu0 0.0
    %495 = vmatpush1.msra.mxu0 0.0
    %496 = vmatprep.subr.mxu0 0.0
    %497 = vmatpush1.msra.mxu0 0.0
    %498 = vmatprep.subr.mxu0 0.0
    %499 = vmatpush1.msra.mxu0 0.0
    %500 = vmatprep.subr.mxu0 0.0
    %501 = vmatpush1.msra.mxu0 0.0
    %502 = vmatprep.subr.mxu0 0.0
    %503 = vmatpush1.msra.mxu0 0.0
    %504 = vmatprep.subr.mxu0 0.0
    %505 = vmatpush1.msra.mxu0 0.0
    %506 = vmatprep.subr.mxu0 0.0
    %507 = vmatpush1.msra.mxu0 0.0
    %508 = vmatprep.subr.mxu0 0.0
    %509 = vmatpush1.msra.mxu0 0.0
    %510 = vmatprep.mubr.f32.mxu0 0.0
    %511 = vmatmul.mubr.f32.gmra.mrb[0].mxu0 %v419
    %v512 = vpop.f32.mrb[0].mxu0
    %v513 = vadd.f32 %v444, %v512
    %v514 = vpop.f32.mrb[0].mxu0
    %515 = vmatprep.mubr.f32.mxu0 0.0
    %516 = vmatmul.mubr.f32.gmra.mrb[0].mxu0 %v420
    %v517 = vpop.f32.mrb[0].mxu0
    %v518 = vadd.f32 %v444, %v517
    %v519 = vpop.f32.mrb[0].mxu0
    %520 = vmatprep.mubr.f32.mxu0 0.0
    %521 = vmatmul.mubr.f32.gmra.mrb[0].mxu0 %v421
    %v522 = vpop.f32.mrb[0].mxu0
    %v523 = vadd.f32 %v444, %v522
    %v524 = vpop.f32.mrb[0].mxu0
    %525 = vmatprep.mubr.f32.mxu0 0.0
    %526 = vmatmul.mubr.f32.gmra.mrb[0].mxu0 %v422
    %v527 = vpop.f32.mrb[0].mxu0
    %v528 = vadd.f32 %v444, %v527
    %v529 = vpop.f32.mrb[0].mxu0
    %530 = vdwg.mxu0
    %v531 = vtanh.pop %v513
    %v532 = vtanh.pop %v518
    %v533 = vtanh.pop %v523
    %v534 = vtanh.pop %v528
    %v535 = vld [vmem:[#allocation6] sm:$0xff]
    %v536 = vld [vmem:[#allocation6 + $0x8] sm:$0xff]
    %v537 = vld [vmem:[#allocation6 + $0x10] sm:$0xff]
    %v538 = vld [vmem:[#allocation6 + $0x18] sm:$0xff]
    %v539 = vld [vmem:[#allocation6 + $0x20] sm:$0xff]
    %v540 = vld [vmem:[#allocation6 + $0x28] sm:$0xff]
    %v541 = vld [vmem:[#allocation6 + $0x30] sm:$0xff]
    %v542 = vld [vmem:[#allocation6 + $0x38] sm:$0xff]
    %v543 = vld [vmem:[#allocation6 + $0x40] sm:$0xff]
    %v544 = vld [vmem:[#allocation6 + $0x48] sm:$0xff]
    %v545 = vld [vmem:[#allocation6 + $0x50] sm:$0xff]
    %v546 = vld [vmem:[#allocation6 + $0x58] sm:$0xff]
    %v547 = vld [vmem:[#allocation6 + $0x60] sm:$0xff]
    %v548 = vld [vmem:[#allocation6 + $0x68] sm:$0xff]
    %v549 = vld [vmem:[#allocation6 + $0x70] sm:$0xff]
    %v550 = vld [vmem:[#allocation6 + $0x78] sm:$0xff]
    %v551 = vld [vmem:[%s10] sm:$0x1]
    %v553 = vlaneseq
    %v554 = vshrl.u32 %v553, 7
    %v555 = vsub.s32 0, %v554
    %v556 = vrot.slane %v551, %v555
    %558 = vmatprep.subr.mxu0 0.0
    %559 = vmatpush1.msra.mxu0 %v535
    %560 = vmatprep.subr.mxu0 0.0
    %561 = vmatpush1.msra.mxu0 %v536
    %562 = vmatprep.subr.mxu0 0.0
    %563 = vmatpush1.msra.mxu0 %v537
    %564 = vmatprep.subr.mxu0 0.0
    %565 = vmatpush1.msra.mxu0 %v538
    %566 = vmatprep.subr.mxu0 0.0
    %567 = vmatpush1.msra.mxu0 %v539
    %568 = vmatprep.subr.mxu0 0.0
    %569 = vmatpush1.msra.mxu0 %v540
    %570 = vmatprep.subr.mxu0 0.0
    %571 = vmatpush1.msra.mxu0 %v541
    %572 = vmatprep.subr.mxu0 0.0
    %573 = vmatpush1.msra.mxu0 %v542
    %574 = vmatprep.subr.mxu0 0.0
    %575 = vmatpush1.msra.mxu0 %v543
    %576 = vmatprep.subr.mxu0 0.0
    %577 = vmatpush1.msra.mxu0 %v544
    %578 = vmatprep.subr.mxu0 0.0
    %579 = vmatpush1.msra.mxu0 %v545
    %580 = vmatprep.subr.mxu0 0.0
    %581 = vmatpush1.msra.mxu0 %v546
    %582 = vmatprep.subr.mxu0 0.0
    %583 = vmatpush1.msra.mxu0 %v547
    %584 = vmatprep.subr.mxu0 0.0
    %585 = vmatpush1.msra.mxu0 %v548
    %586 = vmatprep.subr.mxu0 0.0
    %587 = vmatpush1.msra.mxu0 %v549
    %588 = vmatprep.subr.mxu0 0.0
    %589 = vmatpush1.msra.mxu0 %v550
    %590 = vmatprep.subr.mxu0 0.0
    %591 = vmatpush1.msra.mxu0 0.0
    %592 = vmatprep.subr.mxu0 0.0
    %593 = vmatpush1.msra.mxu0 0.0
    %594 = vmatprep.subr.mxu0 0.0
    %595 = vmatpush1.msra.mxu0 0.0
    %596 = vmatprep.subr.mxu0 0.0
    %597 = vmatpush1.msra.mxu0 0.0
    %598 = vmatprep.subr.mxu0 0.0
    %599 = vmatpush1.msra.mxu0 0.0
    %600 = vmatprep.subr.mxu0 0.0
    %601 = vmatpush1.msra.mxu0 0.0
    %602 = vmatprep.subr.mxu0 0.0
    %603 = vmatpush1.msra.mxu0 0.0
    %604 = vmatprep.subr.mxu0 0.0
    %605 = vmatpush1.msra.mxu0 0.0
    %606 = vmatprep.subr.mxu0 0.0
    %607 = vmatpush1.msra.mxu0 0.0
    %608 = vmatprep.subr.mxu0 0.0
    %609 = vmatpush1.msra.mxu0 0.0
    %610 = vmatprep.subr.mxu0 0.0
    %611 = vmatpush1.msra.mxu0 0.0
    %612 = vmatprep.subr.mxu0 0.0
    %613 = vmatpush1.msra.mxu0 0.0
    %614 = vmatprep.subr.mxu0 0.0
    %615 = vmatpush1.msra.mxu0 0.0
    %616 = vmatprep.subr.mxu0 0.0
    %617 = vmatpush1.msra.mxu0 0.0
    %618 = vmatprep.subr.mxu0 0.0
    %619 = vmatpush1.msra.mxu0 0.0
    %620 = vmatprep.subr.mxu0 0.0
    %621 = vmatpush1.msra.mxu0 0.0
    %622 = vmatprep.mubr.f32.mxu0 0.0
    %623 = vmatmul.mubr.f32.gmra.mrb[0].mxu0 %v531
    %v624 = vpop.f32.mrb[0].mxu0
    %v625 = vadd.f32 %v556, %v624
    %v626 = vpop.f32.mrb[0].mxu0
    %627 = vmatprep.mubr.f32.mxu0 0.0
    %628 = vmatmul.mubr.f32.gmra.mrb[0].mxu0 %v532
    %v629 = vpop.f32.mrb[0].mxu0
    %v630 = vadd.f32 %v556, %v629
    %v631 = vpop.f32.mrb[0].mxu0
    %632 = vmatprep.mubr.f32.mxu0 0.0
    %633 = vmatmul.mubr.f32.gmra.mrb[0].mxu0 %v533
    %v634 = vpop.f32.mrb[0].mxu0
    %v635 = vadd.f32 %v556, %v634
    %v636 = vpop.f32.mrb[0].mxu0
    %637 = vmatprep.mubr.f32.mxu0 0.0
    %638 = vmatmul.mubr.f32.gmra.mrb[0].mxu0 %v534
    %v639 = vpop.f32.mrb[0].mxu0
    %v640 = vadd.f32 %v556, %v639
    %v641 = vpop.f32.mrb[0].mxu0
    %642 = vdwg.mxu0
    %v643 = vtanh.pop %v625
    %v644 = vtanh.pop %v630
    %v645 = vtanh.pop %v635
    %v646 = vtanh.pop %v640
    %v647 = vld [vmem:[%s11] sm:$0xff]
    %v648 = vld [vmem:[%s11 + $0x8] sm:$0xff]
    %v649 = vld [vmem:[%s11 + $0x10] sm:$0xff]
    %v650 = vld [vmem:[%s11 + $0x18] sm:$0xff]
    %v651 = vld [vmem:[%s11 + $0x20] sm:$0xff]
    %v652 = vld [vmem:[%s11 + $0x28] sm:$0xff]
    %v653 = vld [vmem:[%s11 + $0x30] sm:$0xff]
    %v654 = vld [vmem:[%s11 + $0x38] sm:$0xff]
    %v655 = vld [vmem:[%s11 + $0x40] sm:$0xff]
    %v656 = vld [vmem:[%s11 + $0x48] sm:$0xff]
    %v657 = vld [vmem:[%s11 + $0x50] sm:$0xff]
    %v658 = vld [vmem:[%s11 + $0x58] sm:$0xff]
    %v659 = vld [vmem:[%s11 + $0x60] sm:$0xff]
    %v660 = vld [vmem:[%s11 + $0x68] sm:$0xff]
    %v661 = vld [vmem:[%s11 + $0x70] sm:$0xff]
    %v662 = vld [vmem:[%s11 + $0x78] sm:$0xff]
    %v663 = vld [vmem:[%s12] sm:$0x1]
    %v665 = vlaneseq
    %v666 = vshrl.u32 %v665, 7
    %v667 = vsub.s32 0, %v666
    %v668 = vrot.slane %v663, %v667
    %670 = vmatprep.subr.mxu0 0.0
    %671 = vmatpush1.msra.mxu0 %v647
    %672 = vmatprep.subr.mxu0 0.0
    %673 = vmatpush1.msra.mxu0 %v648
    %674 = vmatprep.subr.mxu0 0.0
    %675 = vmatpush1.msra.mxu0 %v649
    %676 = vmatprep.subr.mxu0 0.0
    %677 = vmatpush1.msra.mxu0 %v650
    %678 = vmatprep.subr.mxu0 0.0
    %679 = vmatpush1.msra.mxu0 %v651
    %680 = vmatprep.subr.mxu0 0.0
    %681 = vmatpush1.msra.mxu0 %v652
    %682 = vmatprep.subr.mxu0 0.0
    %683 = vmatpush1.msra.mxu0 %v653
    %684 = vmatprep.subr.mxu0 0.0
    %685 = vmatpush1.msra.mxu0 %v654
    %686 = vmatprep.subr.mxu0 0.0
    %687 = vmatpush1.msra.mxu0 %v655
    %688 = vmatprep.subr.mxu0 0.0
    %689 = vmatpush1.msra.mxu0 %v656
    %690 = vmatprep.subr.mxu0 0.0
    %691 = vmatpush1.msra.mxu0 %v657
    %692 = vmatprep.subr.mxu0 0.0
    %693 = vmatpush1.msra.mxu0 %v658
    %694 = vmatprep.subr.mxu0 0.0
    %695 = vmatpush1.msra.mxu0 %v659
    %696 = vmatprep.subr.mxu0 0.0
    %697 = vmatpush1.msra.mxu0 %v660
    %698 = vmatprep.subr.mxu0 0.0
    %699 = vmatpush1.msra.mxu0 %v661
    %700 = vmatprep.subr.mxu0 0.0
    %701 = vmatpush1.msra.mxu0 %v662
    %702 = vmatprep.subr.mxu0 0.0
    %703 = vmatpush1.msra.mxu0 0.0
    %704 = vmatprep.subr.mxu0 0.0
    %705 = vmatpush1.msra.mxu0 0.0
    %706 = vmatprep.subr.mxu0 0.0
    %707 = vmatpush1.msra.mxu0 0.0
    %708 = vmatprep.subr.mxu0 0.0
    %709 = vmatpush1.msra.mxu0 0.0
    %710 = vmatprep.subr.mxu0 0.0
    %711 = vmatpush1.msra.mxu0 0.0
    %712 = vmatprep.subr.mxu0 0.0
    %713 = vmatpush1.msra.mxu0 0.0
    %714 = vmatprep.subr.mxu0 0.0
    %715 = vmatpush1.msra.mxu0 0.0
    %716 = vmatprep.subr.mxu0 0.0
    %717 = vmatpush1.msra.mxu0 0.0
    %718 = vmatprep.subr.mxu0 0.0
    %719 = vmatpush1.msra.mxu0 0.0
    %720 = vmatprep.subr.mxu0 0.0
    %721 = vmatpush1.msra.mxu0 0.0
    %722 = vmatprep.subr.mxu0 0.0
    %723 = vmatpush1.msra.mxu0 0.0
    %724 = vmatprep.subr.mxu0 0.0
    %725 = vmatpush1.msra.mxu0 0.0
    %726 = vmatprep.subr.mxu0 0.0
    %727 = vmatpush1.msra.mxu0 0.0
    %728 = vmatprep.subr.mxu0 0.0
    %729 = vmatpush1.msra.mxu0 0.0
    %730 = vmatprep.subr.mxu0 0.0
    %731 = vmatpush1.msra.mxu0 0.0
    %732 = vmatprep.subr.mxu0 0.0
    %733 = vmatpush1.msra.mxu0 0.0
    %734 = vmatprep.mubr.f32.mxu0 0.0
    %735 = vmatmul.mubr.f32.gmra.mrb[0].mxu0 %v643
    %v736 = vpop.f32.mrb[0].mxu0
    %v737 = vadd.f32 %v668, %v736
    %v738 = vpop.f32.mrb[0].mxu0
    %739 = vmatprep.mubr.f32.mxu0 0.0
    %740 = vmatmul.mubr.f32.gmra.mrb[0].mxu0 %v644
    %v741 = vpop.f32.mrb[0].mxu0
    %v742 = vadd.f32 %v668, %v741
    %v743 = vpop.f32.mrb[0].mxu0
    %744 = vmatprep.mubr.f32.mxu0 0.0
    %745 = vmatmul.mubr.f32.gmra.mrb[0].mxu0 %v645
    %v746 = vpop.f32.mrb[0].mxu0
    %v747 = vadd.f32 %v668, %v746
    %v748 = vpop.f32.mrb[0].mxu0
    %749 = vmatprep.mubr.f32.mxu0 0.0
    %750 = vmatmul.mubr.f32.gmra.mrb[0].mxu0 %v646
    %v751 = vpop.f32.mrb[0].mxu0
    %v752 = vadd.f32 %v668, %v751
    %v753 = vpop.f32.mrb[0].mxu0
    %754 = vdwg.mxu0
    %vm755 = vcmask 31744
    %756 = vst.msk [vmem:[%s13] sm:$0xff] %vm755, %v737
    %757 = vst.msk [vmem:[%s13 + $0x8] sm:$0xff] %vm755, %v742
    %758 = vst.msk [vmem:[%s13 + $0x10] sm:$0xff] %vm755, %v747
    %759 = vst.msk [vmem:[%s13 + $0x18] sm:$0xff] %vm755, %v752
    // Predicated region
    $region66: #{tpu_custom_call.1} parent=1 // pred_check
      _
    $region67: #{tpu_custom_call.1} parent=1 // pred_check_branch
      %761 = sbr.rel (0) target = $region69
    $region68: #{tpu_custom_call.1} parent=1 // pred_region
      _
    $region69: #{tpu_custom_call.1} parent=1 // pred_fallthru
      _
    // Predicated region
    $region70: #{tpu_custom_call.1} parent=1 // pred_check
      _
    $region71: #{tpu_custom_call.1} parent=1 // pred_check_branch
      %763 = sbr.rel (0) target = $region73
    $region72: #{tpu_custom_call.1} parent=1 // pred_region
      _
    $region73: #{tpu_custom_call.1} parent=1 // pred_fallthru
      _
    %764 = vsyncpa [#allocation3], 1
    %765 = vsyncpa [#allocation5], 1

</llo_original>
